<compile_context>
chip_gen: v7x
topology: tpu7x:2x2x1
jax: 0.10.0
libtpu: 0.0.40
codegen_flags: <defaults>
</compile_context>

<pallas_src>
import functools

import jax
import jax.numpy as jnp
from jax.experimental import pallas as pl
from jax.experimental.pallas import tpu as pltpu


# ----------------------------------------------------------------------------
# helpers
# ----------------------------------------------------------------------------
def _pick_tile(n, target=512):
    """Largest multiple-of-8 tile <= target that divides n."""
    t = min(target, n)
    t -= t % 8
    while t >= 8 and n % t != 0:
        t -= 8
    if t < 8:
        raise ValueError(f"no multiple-of-8 tile divides n={n}")
    return t


def _pad_to_lanes(x, lanes=128):
    """Zero-pad the last (feature) dim up to a multiple of `lanes`."""
    d = x.shape[-1]
    d_pad = ((d + lanes - 1) // lanes) * lanes
    if d_pad == d:
        return x
    return jnp.pad(x, ((0, 0), (0, d_pad - d)))


# ----------------------------------------------------------------------------
# Kernel 1: tiled propagation matmul  out = adj @ emb
#   grid = (M_tiles, K_tiles); K (reduction) last, "arbitrary".
#   A (adj) is streamed tile-by-tile; B (emb) is a full-array VMEM-resident
#   block (constant index_map -> DMA'd once, reused by every grid step).
# ----------------------------------------------------------------------------
def _prop_matmul_kernel(a_ref, b_ref, o_ref, acc_ref, *, tk):
    k = pl.program_id(1)

    @pl.when(k == 0)
    def _():
        acc_ref[...] = jnp.zeros_like(acc_ref)

    k0 = pl.multiple_of(k * tk, tk)
    acc_ref[...] += jnp.dot(
        a_ref[...], b_ref[pl.ds(k0, tk), :],
        preferred_element_type=jnp.float32)

    @pl.when(k == pl.num_programs(1) - 1)
    def _():
        o_ref[...] = acc_ref[...].astype(o_ref.dtype)


def adj_matmul(adj, emb, *, tm=None, tk=None, out_dtype=None):
    N, K = adj.shape
    K2, D = emb.shape
    assert K == K2
    assert D % 128 == 0, "pad the feature dim to a lane multiple first"
    tm = tm or _pick_tile(N, 512)
    tk = tk or _pick_tile(K, 512)
    out_dtype = out_dtype or emb.dtype

    adj_bytes = jnp.dtype(adj.dtype).itemsize
    emb_bytes = jnp.dtype(emb.dtype).itemsize
    out_bytes = jnp.dtype(out_dtype).itemsize

    # VMEM plan: 2x double-buffered A tiles + resident B + f32 acc + 2x out.
    # Clamp so the plan also fits v7x (64 MiB physical VMEM per TensorCore).
    vmem_need = (2 * tm * tk * adj_bytes + K * D * emb_bytes
                 + tm * D * 4 + 2 * tm * D * out_bytes)
    vmem_limit = int(min(max(2 * vmem_need, 32 << 20), 60 << 20))

    cost = pl.CostEstimate(
        flops=2 * N * K * D,
        transcendentals=0,
        bytes_accessed=N * K * adj_bytes + K * D * emb_bytes + N * D * out_bytes,
    )

    kernel = functools.partial(_prop_matmul_kernel, tk=tk)
    return pl.pallas_call(
        kernel,
        out_shape=jax.ShapeDtypeStruct((N, D), out_dtype),
        grid_spec=pltpu.PrefetchScalarGridSpec(
            num_scalar_prefetch=0,
            grid=(N // tm, K // tk),
            in_specs=[
                pl.BlockSpec((tm, tk), lambda i, k: (i, k)),   # adj tile (streamed)
                pl.BlockSpec((K, D), lambda i, k: (0, 0)),     # emb resident in VMEM
            ],
            out_specs=pl.BlockSpec((tm, D), lambda i, k: (i, 0)),
            scratch_shapes=[pltpu.VMEM((tm, D), jnp.float32)],
        ),
        compiler_params=pltpu.CompilerParams(
            dimension_semantics=("parallel", "arbitrary"),
            vmem_limit_bytes=vmem_limit),
        cost_estimate=cost,
    )(adj, emb)


# ----------------------------------------------------------------------------
# GraphConv.forward equivalent (encoder)
#   mean over stacked layer embeddings == incremental sum / (L+1)
# ----------------------------------------------------------------------------
def graph_conv_forward(all_emb, adj_mat, conv_layers, n_users, n_items,
                       *, compute_dtype=jnp.bfloat16):
    N, D = all_emb.shape
    emb_pad = _pad_to_lanes(all_emb)                     # [N, D_pad], lane-dense

    adj_c = adj_mat.astype(compute_dtype)
    temp = emb_pad.astype(compute_dtype)
    light_sum = emb_pad.astype(jnp.float32)              # layer-0 contribution
    for _ in range(conv_layers):
        temp = adj_matmul(adj_c, temp)                   # bf16 out, f32 MXU acc
        light_sum = light_sum + temp.astype(jnp.float32)

    light_out = (light_sum / jnp.float32(conv_layers + 1))[:, :D]
    user_emb = light_out[:n_users]
    item_emb = light_out[n_users:n_users + n_items]
    return user_emb, item_emb


# ----------------------------------------------------------------------------
# Kernel 2: Disentangle decoder
#   user_int[u, j, :] = user_emb[u, :] * disen_weight[j, :]
#   (disen_weight = softmax(att) @ weight is a tiny parameter-only matmul,
#    computed in plain JAX — not worth a kernel.)
# ----------------------------------------------------------------------------
def _disentangle_kernel(u_ref, dw_ref, o_ref):
    o_ref[...] = u_ref[...][:, None, :] * dw_ref[...][None, :, :]


def disentangle_forward(user_emb, disen_weight_att, weight, *, tm=None):
    n_users, D = user_emb.shape
    n_intent = disen_weight_att.shape[0]
    disen_weight = jnp.dot(jax.nn.softmax(disen_weight_att, axis=-1),
                           weight).astype(user_emb.dtype)   # [n_intent, D]
    tm = tm or _pick_tile(n_users, 512)
    return pl.pallas_call(
        _disentangle_kernel,
        out_shape=jax.ShapeDtypeStruct((n_users, n_intent, D), user_emb.dtype),
        grid_spec=pltpu.PrefetchScalarGridSpec(
            num_scalar_prefetch=0,
            grid=(n_users // tm,),
            in_specs=[
                pl.BlockSpec((tm, D), lambda i: (i, 0)),
                pl.BlockSpec((n_intent, D), lambda i: (0, 0)),
            ],
            out_specs=pl.BlockSpec((tm, n_intent, D), lambda i: (i, 0, 0)),
        ),
        compiler_params=pltpu.CompilerParams(
            dimension_semantics=("parallel",)),
    )(user_emb, disen_weight)


# ----------------------------------------------------------------------------
# MRAM.forward / MRAM.generate equivalents
# ----------------------------------------------------------------------------
def _bpr_loss(users, pos_items, neg_items):
    pos_scores = jnp.sum(users * pos_items, axis=1)
    neg_scores = jnp.sum(users * neg_items, axis=1)
    return -jnp.mean(jax.nn.log_sigmoid(pos_scores - neg_scores))


def mram_generate(params, *, n_layer, n_users, n_items):
    user_emb, item_emb = graph_conv_forward(
        params["all_embed"], params["adj_mat"], n_layer, n_users, n_items)
    user_int_emb = disentangle_forward(
        user_emb, params["disen_weight_att"], params["weight"])
    return user_int_emb, item_emb


def mram_forward(params, batch, *, n_layer, n_users, n_items):
    user_int_emb, item_emb = mram_generate(
        params, n_layer=n_layer, n_users=n_users, n_items=n_items)
    n_intent = params["disen_weight_att"].shape[0]
    losses = []
    for idx in range(n_intent):
        # TODO(synk): batch-index gathers stay in plain JAX (jnp.take); a
        #             data-dependent row gather has no clean BlockSpec form.
        u_e = user_int_emb[:, idx, :][batch["users"]]
        pos_e = item_emb[batch["pos_items"]]
        neg_e = item_emb[batch["neg_items"]]
        losses.append(_bpr_loss(u_e, pos_e, neg_e))
    return sum(losses) / len(losses)


# ----------------------------------------------------------------------------
# main: small deterministic shapes + plain-JAX reference check
# ----------------------------------------------------------------------------
if __name__ == "__main__":
    n_users, n_items, emb_dim = 128, 128, 64
    n_layer, n_intent, n_relations = 3, 4, 4
    batch_size = 32
    n_nodes = n_users + n_items

    key = jax.random.PRNGKey(0)
    k_emb, k_adj, k_att, k_w, k_u, k_p, k_n = jax.random.split(key, 7)

    all_embed = jax.random.normal(k_emb, (n_nodes, emb_dim), jnp.float32) * 0.1
    adj_raw = jax.random.uniform(k_adj, (n_nodes, n_nodes), jnp.float32)
    adj_mat = adj_raw / jnp.sum(adj_raw, axis=1, keepdims=True)  # dense row-norm adj
    disen_weight_att = jax.random.normal(
        k_att, (n_intent, n_relations - 1), jnp.float32) * 0.1
    weight = jax.random.normal(k_w, (n_relations - 1, emb_dim), jnp.float32) * 0.1

    batch = {
        "users": jax.random.randint(k_u, (batch_size,), 0, n_users),
        "pos_items": jax.random.randint(k_p, (batch_size,), 0, n_items),
        "neg_items": jax.random.randint(k_n, (batch_size,), 0, n_items),
    }
    params = {"all_embed": all_embed, "adj_mat": adj_mat,
              "disen_weight_att": disen_weight_att, "weight": weight}

    loss = mram_forward(params, batch, n_layer=n_layer,
                        n_users=n_users, n_items=n_items)
    user_int_emb, item_emb = mram_generate(
        params, n_layer=n_layer, n_users=n_users, n_items=n_items)
    jax.block_until_ready((loss, user_int_emb, item_emb))

    # ---- plain-JAX reference (mirrors the bf16 operand / f32 accumulate) ----
    adj_bf = adj_mat.astype(jnp.bfloat16)
    t = all_embed.astype(jnp.bfloat16)
    light = all_embed.astype(jnp.float32)
    for _ in range(n_layer):
        t = jnp.dot(adj_bf, t,
                    preferred_element_type=jnp.float32).astype(jnp.bfloat16)
        light = light + t.astype(jnp.float32)
    light = light / (n_layer + 1)
    ref_user_emb = light[:n_users]
    ref_item_emb = light[n_users:n_users + n_items]
    ref_dw = jnp.dot(jax.nn.softmax(disen_weight_att, axis=-1), weight)
    ref_user_int = ref_user_emb[:, None, :] * ref_dw[None, :, :]
    ref_losses = []
    for idx in range(n_intent):
        u_e = ref_user_int[:, idx, :][batch["users"]]
        pos_e = ref_item_emb[batch["pos_items"]]
        neg_e = ref_item_emb[batch["neg_items"]]
        ref_losses.append(_bpr_loss(u_e, pos_e, neg_e))
    ref_loss = sum(ref_losses) / len(ref_losses)

    assert user_int_emb.shape == (n_users, n_intent, emb_dim)
    assert item_emb.shape == (n_items, emb_dim)
    assert jnp.allclose(item_emb, ref_item_emb, atol=1e-4, rtol=1e-2)
    assert jnp.allclose(user_int_emb, ref_user_int, atol=1e-4, rtol=1e-2)
    assert jnp.allclose(loss, ref_loss, atol=1e-4, rtol=1e-3)

    print("KERNEL_OK")
</pallas_src>

<mosaic_0001>
module attributes {stable_mosaic.version = 11 : i64} {
  func.func @_prop_matmul_kernel(%arg0: i32, %arg1: i32, %arg2: memref<256x256xbf16, #tpu.memory_space<vmem>>, %arg3: memref<256x128xbf16, #tpu.memory_space<vmem>>, %arg4: memref<256x128xbf16, #tpu.memory_space<vmem>>, %arg5: memref<256x128xf32, #tpu.memory_space<vmem>>) attributes {dimension_semantics = [#tpu.dimension_semantics<parallel>, #tpu.dimension_semantics<arbitrary>], iteration_bounds = array<i64: 1, 1>, scalar_prefetch = 0 : i64, scratch_operands = 1 : i64, tpu.core_type = #tpu.core_type<tc>, window_params = [{transform_indices = @transform_0, window_bounds = array<i64: 256, 256>}, {pipeline_mode = #tpu.pipeline_mode<synchronous>, transform_indices = @transform_1, window_bounds = array<i64: 256, 128>}, {transform_indices = @transform_2, window_bounds = array<i64: 256, 128>}]} {
    %c0_i32 = arith.constant 0 : i32
    %0 = arith.cmpi eq, %arg1, %c0_i32 : i32
    %1 = arith.extui %0 : i1 to i32
    %c0_i32_0 = arith.constant 0 : i32
    %2 = arith.cmpi ne, %1, %c0_i32_0 : i32
    scf.if %2 {
      %cst_9 = arith.constant 0.000000e+00 : f32
      %15 = vector.broadcast %cst_9 : f32 to vector<256x128xf32>
      %c0_10 = arith.constant 0 : index
      %c0_11 = arith.constant 0 : index
      %16 = vector.load %arg5[%c0_10, %c0_11] : memref<256x128xf32, #tpu.memory_space<vmem>>, vector<256x128xf32>
      tpu.vector_store %arg5[%c0_10, %c0_11], %15 {strides = array<i32>} : memref<256x128xf32, #tpu.memory_space<vmem>>, vector<256x128xf32>,
    } else {
    }
    %c256_i32 = arith.constant 256 : i32
    %3 = arith.muli %arg1, %c256_i32 : i32
    %4 = tpu.assume_multiple %3, 256 : i32
    %c0 = arith.constant 0 : index
    %c0_1 = arith.constant 0 : index
    %5 = vector.load %arg5[%c0, %c0_1] : memref<256x128xf32, #tpu.memory_space<vmem>>, vector<256x128xf32>
    %c0_2 = arith.constant 0 : index
    %c0_3 = arith.constant 0 : index
    %6 = vector.load %arg2[%c0_2, %c0_3] : memref<256x256xbf16, #tpu.memory_space<vmem>>, vector<256x256xbf16>
    %7 = arith.index_cast %4 : i32 to index
    %c0_4 = arith.constant 0 : index
    %8 = vector.load %arg3[%7, %c0_4] : memref<256x128xbf16, #tpu.memory_space<vmem>>, vector<256x128xbf16>
    %cst = arith.constant dense<0.000000e+00> : vector<256x128xf32>
    %9 = tpu.matmul %6, %8, %cst {dimension_numbers = #tpu.dot_dimension_numbers<[1], [0], [0], [1], [0, 0, 1, 1], [], []>} : vector<256x256xbf16>, vector<256x128xbf16>, vector<256x128xf32> -> vector<256x128xf32>
    %10 = arith.addf %5, %9 : vector<256x128xf32>
    %c0_5 = arith.constant 0 : index
    %c0_6 = arith.constant 0 : index
    %11 = vector.load %arg5[%c0_5, %c0_6] : memref<256x128xf32, #tpu.memory_space<vmem>>, vector<256x128xf32>
    tpu.vector_store %arg5[%c0_5, %c0_6], %10 {strides = array<i32>} : memref<256x128xf32, #tpu.memory_space<vmem>>, vector<256x128xf32>,
    %c0_i32_7 = arith.constant 0 : i32
    %12 = arith.cmpi eq, %arg1, %c0_i32_7 : i32
    %13 = arith.extui %12 : i1 to i32
    %c0_i32_8 = arith.constant 0 : i32
    %14 = arith.cmpi ne, %13, %c0_i32_8 : i32
    scf.if %14 {
      %c0_9 = arith.constant 0 : index
      %c0_10 = arith.constant 0 : index
      %15 = vector.load %arg5[%c0_9, %c0_10] : memref<256x128xf32, #tpu.memory_space<vmem>>, vector<256x128xf32>
      %16 = arith.truncf %15 : vector<256x128xf32> to vector<256x128xbf16>
      %c0_11 = arith.constant 0 : index
      %c0_12 = arith.constant 0 : index
      %17 = vector.load %arg4[%c0_11, %c0_12] : memref<256x128xbf16, #tpu.memory_space<vmem>>, vector<256x128xbf16>
      tpu.vector_store %arg4[%c0_11, %c0_12], %16 {strides = array<i32>} : memref<256x128xbf16, #tpu.memory_space<vmem>>, vector<256x128xbf16>,
    } else {
    }
    return
  }
  func.func @transform_0(%arg0: i32, %arg1: i32) -> (i32, i32) {
    %c0_i32 = arith.constant 0 : i32
    return %arg0, %arg1 : i32, i32
  }
  func.func @transform_1(%arg0: i32, %arg1: i32) -> (i32, i32) {
    %c0_i32 = arith.constant 0 : i32
    %c0_i32_0 = arith.constant 0 : i32
    %c0_i32_1 = arith.constant 0 : i32
    return %c0_i32, %c0_i32_0 : i32, i32
  }
  func.func @transform_2(%arg0: i32, %arg1: i32) -> (i32, i32) {
    %c0_i32 = arith.constant 0 : i32
    %c0_i32_0 = arith.constant 0 : i32
    return %arg0, %c0_i32 : i32, i32
  }
}

</mosaic_0001>

<llo_original>
// kernel: tpu_custom_call.1
$region0: #{tpu_custom_call.1}
  #allocation0 [shape = 'u32[]', space=smem, size = 0x4, offset = 0x4, fixed_abs, tag = 'smem constant byte address 0x4 - core index']
  #allocation1 [shape = 'u32[144,128]{1,0:T(1,128)}', space=vmem, size = 0x12000, scoped, tag = 'internal scratch']
  #allocation2 [shape = 'f32[256,128]{1,0:T(8,128)}', space=vmem, size = 0x20000, scoped, tag = 'scratch operand']
  %s0 = inlined_call_operand.hbm [shape: bf16[256,256], index: 0, kind: input, shape index: {}]
  %s1 = inlined_call_operand.hbm [shape: bf16[256,128], index: 1, kind: input, shape index: {}]
  %s2 = inlined_call_operand.hbm [shape: bf16[256,128], index: 2, kind: output, shape index: {}]
  %s3 = sld [smem:[#allocation0]]
  $region34: #{tpu_custom_call.1} parent=0
    _
  %s5 = ssub.s32 1, %s3
  %s6 = scalar_select 0, %s5, %s3
  $region1: #{tpu_custom_call.1} parent=0
    #allocation3 [shape = 'u8[131072]{0}', space=vmem, size = 0x20000, scoped, tag = 'input window, operand 0, single buffered']
    #allocation4 [shape = 's32[1]{0}', space=sflag, size = 0x4, scoped, tag = 'scoped memory for tpu_custom_call.1']
    #allocation5 [shape = 's32[1]{0}', space=sflag, size = 0x4, scoped, tag = 'scoped memory for tpu_custom_call.1']
    #allocation6 [shape = 'u8[65536]{0}', space=vmem, size = 0x10000, scoped, tag = 'input window, operand 1, single buffered']
    #allocation7 [shape = 's32[1]{0}', space=sflag, size = 0x4, scoped, tag = 'scoped memory for tpu_custom_call.1']
    #allocation8 [shape = 'u8[65536]{0}', space=vmem, size = 0x10000, scoped, tag = 'output window, operand 0, single buffered']
    %7 = vsyncpa [#allocation4], 0
    %8 = vsyncpa [#allocation7], 0
    %9 = vsyncpa [#allocation5], 0
    // Predicated region
    $region2: #{tpu_custom_call.1} parent=1 // pred_check
      _
    $region3: #{tpu_custom_call.1} parent=1 // pred_check_branch
      %11 = sbr.rel (0) target = $region5
    $region4: #{tpu_custom_call.1} parent=1 // pred_region
      %s13 = ssub.s32 4096, 4096
      %14 = vsyncadd [#allocation4], %s13
      %s15 = sshll.u32 [#allocation3], 4
      %s16 = int_to_ptr.vmem [resolvable:$true] %s15
      %21 = dma.hbm_to_vmem [thread:$0]  %s0, 4096, %s16, [#allocation4], 128, 128, 8
    $region5: #{tpu_custom_call.1} parent=1 // pred_fallthru
      _
    // Predicated region
    $region6: #{tpu_custom_call.1} parent=1 // pred_check
      _
    $region7: #{tpu_custom_call.1} parent=1 // pred_check_branch
      %23 = sbr.rel (0) target = $region9
    $region8: #{tpu_custom_call.1} parent=1 // pred_region
      %s25 = ssub.s32 2048, 2048
      %26 = vsyncadd [#allocation7], %s25
      %s27 = sshll.u32 [#allocation6], 4
      %s28 = int_to_ptr.vmem [resolvable:$true] %s27
      %33 = dma.hbm_to_vmem [thread:$0]  %s1, 2048, %s28, [#allocation7], 64, 64, 4
    $region9: #{tpu_custom_call.1} parent=1 // pred_fallthru
      _
    // Predicated region
    $region10: #{tpu_custom_call.1} parent=1 // pred_check
      _
    $region11: #{tpu_custom_call.1} parent=1 // pred_check_branch
      %35 = sbr.rel (0) target = $region13
    $region12: #{tpu_custom_call.1} parent=1 // pred_region
      %36 = dma.done [#allocation4], 4096
    $region13: #{tpu_custom_call.1} parent=1 // pred_fallthru
      _
    // Predicated region
    $region14: #{tpu_custom_call.1} parent=1 // pred_check
      _
    $region15: #{tpu_custom_call.1} parent=1 // pred_check_branch
      %38 = sbr.rel (0) target = $region17
    $region16: #{tpu_custom_call.1} parent=1 // pred_region
      %39 = dma.done [#allocation7], 2048
    $region17: #{tpu_custom_call.1} parent=1 // pred_fallthru
      _
    %p41 = scmp.eq.s32.totalorder 0, 0
    // Predicated region
    $region18: #{tpu_custom_call.1} parent=1 // pred_check
      %p42 = pneg %p41
    $region19: #{tpu_custom_call.1} parent=1 // pred_check_branch
      %44 = sbr.rel (%p42) target = $region21
    $region20: #{tpu_custom_call.1} parent=1 // pred_region
      %45 = vst [vmem:[#allocation2] sm:$0xff] 0.0
      %46 = vst [vmem:[#allocation2 + $0x8] sm:$0xff] 0.0
      %47 = vst [vmem:[#allocation2 + $0x10] sm:$0xff] 0.0
      %48 = vst [vmem:[#allocation2 + $0x18] sm:$0xff] 0.0
      %49 = vst [vmem:[#allocation2 + $0x20] sm:$0xff] 0.0
      %50 = vst [vmem:[#allocation2 + $0x28] sm:$0xff] 0.0
      %51 = vst [vmem:[#allocation2 + $0x30] sm:$0xff] 0.0
      %52 = vst [vmem:[#allocation2 + $0x38] sm:$0xff] 0.0
      %53 = vst [vmem:[#allocation2 + $0x40] sm:$0xff] 0.0
      %54 = vst [vmem:[#allocation2 + $0x48] sm:$0xff] 0.0
      %55 = vst [vmem:[#allocation2 + $0x50] sm:$0xff] 0.0
      %56 = vst [vmem:[#allocation2 + $0x58] sm:$0xff] 0.0
      %57 = vst [vmem:[#allocation2 + $0x60] sm:$0xff] 0.0
      %58 = vst [vmem:[#allocation2 + $0x68] sm:$0xff] 0.0
      %59 = vst [vmem:[#allocation2 + $0x70] sm:$0xff] 0.0
      %60 = vst [vmem:[#allocation2 + $0x78] sm:$0xff] 0.0
      %61 = vst [vmem:[#allocation2 + $0x80] sm:$0xff] 0.0
      %62 = vst [vmem:[#allocation2 + $0x88] sm:$0xff] 0.0
      %63 = vst [vmem:[#allocation2 + $0x90] sm:$0xff] 0.0
      %64 = vst [vmem:[#allocation2 + $0x98] sm:$0xff] 0.0
      %65 = vst [vmem:[#allocation2 + $0xa0] sm:$0xff] 0.0
      %66 = vst [vmem:[#allocation2 + $0xa8] sm:$0xff] 0.0
      %67 = vst [vmem:[#allocation2 + $0xb0] sm:$0xff] 0.0
      %68 = vst [vmem:[#allocation2 + $0xb8] sm:$0xff] 0.0
      %69 = vst [vmem:[#allocation2 + $0xc0] sm:$0xff] 0.0
      %70 = vst [vmem:[#allocation2 + $0xc8] sm:$0xff] 0.0
      %71 = vst [vmem:[#allocation2 + $0xd0] sm:$0xff] 0.0
      %72 = vst [vmem:[#allocation2 + $0xd8] sm:$0xff] 0.0
      %73 = vst [vmem:[#allocation2 + $0xe0] sm:$0xff] 0.0
      %74 = vst [vmem:[#allocation2 + $0xe8] sm:$0xff] 0.0
      %75 = vst [vmem:[#allocation2 + $0xf0] sm:$0xff] 0.0
      %76 = vst [vmem:[#allocation2 + $0xf8] sm:$0xff] 0.0
    $region21: #{tpu_custom_call.1} parent=1 // pred_fallthru
      _
    %s77 = smul.u32 0, 256
    %v78 = vld [vmem:[#allocation2] sm:$0xff]
    %v79 = vld [vmem:[#allocation2 + $0x8] sm:$0xff]
    %v80 = vld [vmem:[#allocation2 + $0x10] sm:$0xff]
    %v81 = vld [vmem:[#allocation2 + $0x18] sm:$0xff]
    %v82 = vld [vmem:[#allocation2 + $0x20] sm:$0xff]
    %v83 = vld [vmem:[#allocation2 + $0x28] sm:$0xff]
    %v84 = vld [vmem:[#allocation2 + $0x30] sm:$0xff]
    %v85 = vld [vmem:[#allocation2 + $0x38] sm:$0xff]
    %v86 = vld [vmem:[#allocation2 + $0x40] sm:$0xff]
    %v87 = vld [vmem:[#allocation2 + $0x48] sm:$0xff]
    %v88 = vld [vmem:[#allocation2 + $0x50] sm:$0xff]
    %v89 = vld [vmem:[#allocation2 + $0x58] sm:$0xff]
    %v90 = vld [vmem:[#allocation2 + $0x60] sm:$0xff]
    %v91 = vld [vmem:[#allocation2 + $0x68] sm:$0xff]
    %v92 = vld [vmem:[#allocation2 + $0x70] sm:$0xff]
    %v93 = vld [vmem:[#allocation2 + $0x78] sm:$0xff]
    %v94 = vld [vmem:[#allocation2 + $0x80] sm:$0xff]
    %v95 = vld [vmem:[#allocation2 + $0x88] sm:$0xff]
    %v96 = vld [vmem:[#allocation2 + $0x90] sm:$0xff]
    %v97 = vld [vmem:[#allocation2 + $0x98] sm:$0xff]
    %v98 = vld [vmem:[#allocation2 + $0xa0] sm:$0xff]
    %v99 = vld [vmem:[#allocation2 + $0xa8] sm:$0xff]
    %v100 = vld [vmem:[#allocation2 + $0xb0] sm:$0xff]
    %v101 = vld [vmem:[#allocation2 + $0xb8] sm:$0xff]
    %v102 = vld [vmem:[#allocation2 + $0xc0] sm:$0xff]
    %v103 = vld [vmem:[#allocation2 + $0xc8] sm:$0xff]
    %v104 = vld [vmem:[#allocation2 + $0xd0] sm:$0xff]
    %v105 = vld [vmem:[#allocation2 + $0xd8] sm:$0xff]
    %v106 = vld [vmem:[#allocation2 + $0xe0] sm:$0xff]
    %v107 = vld [vmem:[#allocation2 + $0xe8] sm:$0xff]
    %v108 = vld [vmem:[#allocation2 + $0xf0] sm:$0xff]
    %v109 = vld [vmem:[#allocation2 + $0xf8] sm:$0xff]
    %v110 = vld [vmem:[#allocation3] sm:$0xff]
    %v111 = vld [vmem:[#allocation3 + $0x8] sm:$0xff]
    %v112 = vld [vmem:[#allocation3 + $0x10] sm:$0xff]
    %v113 = vld [vmem:[#allocation3 + $0x18] sm:$0xff]
    %v114 = vld [vmem:[#allocation3 + $0x20] sm:$0xff]
    %v115 = vld [vmem:[#allocation3 + $0x28] sm:$0xff]
    %v116 = vld [vmem:[#allocation3 + $0x30] sm:$0xff]
    %v117 = vld [vmem:[#allocation3 + $0x38] sm:$0xff]
    %v118 = vld [vmem:[#allocation3 + $0x40] sm:$0xff]
    %v119 = vld [vmem:[#allocation3 + $0x48] sm:$0xff]
    %v120 = vld [vmem:[#allocation3 + $0x50] sm:$0xff]
    %v121 = vld [vmem:[#allocation3 + $0x58] sm:$0xff]
    %v122 = vld [vmem:[#allocation3 + $0x60] sm:$0xff]
    %v123 = vld [vmem:[#allocation3 + $0x68] sm:$0xff]
    %v124 = vld [vmem:[#allocation3 + $0x70] sm:$0xff]
    %v125 = vld [vmem:[#allocation3 + $0x78] sm:$0xff]
    %v126 = vld [vmem:[#allocation3 + $0x80] sm:$0xff]
    %v127 = vld [vmem:[#allocation3 + $0x88] sm:$0xff]
    %v128 = vld [vmem:[#allocation3 + $0x90] sm:$0xff]
    %v129 = vld [vmem:[#allocation3 + $0x98] sm:$0xff]
    %v130 = vld [vmem:[#allocation3 + $0xa0] sm:$0xff]
    %v131 = vld [vmem:[#allocation3 + $0xa8] sm:$0xff]
    %v132 = vld [vmem:[#allocation3 + $0xb0] sm:$0xff]
    %v133 = vld [vmem:[#allocation3 + $0xb8] sm:$0xff]
    %v134 = vld [vmem:[#allocation3 + $0xc0] sm:$0xff]
    %v135 = vld [vmem:[#allocation3 + $0xc8] sm:$0xff]
    %v136 = vld [vmem:[#allocation3 + $0xd0] sm:$0xff]
    %v137 = vld [vmem:[#allocation3 + $0xd8] sm:$0xff]
    %v138 = vld [vmem:[#allocation3 + $0xe0] sm:$0xff]
    %v139 = vld [vmem:[#allocation3 + $0xe8] sm:$0xff]
    %v140 = vld [vmem:[#allocation3 + $0xf0] sm:$0xff]
    %v141 = vld [vmem:[#allocation3 + $0xf8] sm:$0xff]
    %s142 = sshra.s32 %s77, 3
    %s143 = sand.u32 %s77, 7
    %s144 = smul.addr %s142, 4
    %s145 = scalar_lea.vmem [#allocation6], %s144
    %v146 = vld [vmem:[%s145] sm:$0xf]
    %v147 = vld [vmem:[%s145 + $0x4] sm:$0xf]
    %v148 = vld [vmem:[%s145 + $0x8] sm:$0xf]
    %v149 = vld [vmem:[%s145 + $0xc] sm:$0xf]
    %v150 = vld [vmem:[%s145 + $0x10] sm:$0xf]
    %v151 = vld [vmem:[%s145 + $0x14] sm:$0xf]
    %v152 = vld [vmem:[%s145 + $0x18] sm:$0xf]
    %v153 = vld [vmem:[%s145 + $0x1c] sm:$0xf]
    %v154 = vld [vmem:[%s145 + $0x20] sm:$0xf]
    %v155 = vld [vmem:[%s145 + $0x24] sm:$0xf]
    %v156 = vld [vmem:[%s145 + $0x28] sm:$0xf]
    %v157 = vld [vmem:[%s145 + $0x2c] sm:$0xf]
    %v158 = vld [vmem:[%s145 + $0x30] sm:$0xf]
    %v159 = vld [vmem:[%s145 + $0x34] sm:$0xf]
    %v160 = vld [vmem:[%s145 + $0x38] sm:$0xf]
    %v161 = vld [vmem:[%s145 + $0x3c] sm:$0xf]
    %v162 = vld [vmem:[%s145 + $0x40] sm:$0xf]
    %v163 = vld [vmem:[%s145 + $0x44] sm:$0xf]
    %v164 = vld [vmem:[%s145 + $0x48] sm:$0xf]
    %v165 = vld [vmem:[%s145 + $0x4c] sm:$0xf]
    %v166 = vld [vmem:[%s145 + $0x50] sm:$0xf]
    %v167 = vld [vmem:[%s145 + $0x54] sm:$0xf]
    %v168 = vld [vmem:[%s145 + $0x58] sm:$0xf]
    %v169 = vld [vmem:[%s145 + $0x5c] sm:$0xf]
    %v170 = vld [vmem:[%s145 + $0x60] sm:$0xf]
    %v171 = vld [vmem:[%s145 + $0x64] sm:$0xf]
    %v172 = vld [vmem:[%s145 + $0x68] sm:$0xf]
    %v173 = vld [vmem:[%s145 + $0x6c] sm:$0xf]
    %v174 = vld [vmem:[%s145 + $0x70] sm:$0xf]
    %v175 = vld [vmem:[%s145 + $0x74] sm:$0xf]
    %v176 = vld [vmem:[%s145 + $0x78] sm:$0xf]
    %v177 = vld [vmem:[%s145 + $0x7c] sm:$0xf]
    %v210 = vunpack.c.l.b16 %v110
    %v211 = vunpack.c.h.b16 %v110
    %v212 = vunpack.c.l.b16 %v111
    %v213 = vunpack.c.h.b16 %v111
    %v214 = vunpack.c.l.b16 %v112
    %v215 = vunpack.c.h.b16 %v112
    %v216 = vunpack.c.l.b16 %v113
    %v217 = vunpack.c.h.b16 %v113
    %v218 = vunpack.c.l.b16 %v114
    %v219 = vunpack.c.h.b16 %v114
    %v220 = vunpack.c.l.b16 %v115
    %v221 = vunpack.c.h.b16 %v115
    %v222 = vunpack.c.l.b16 %v116
    %v223 = vunpack.c.h.b16 %v116
    %v224 = vunpack.c.l.b16 %v117
    %v225 = vunpack.c.h.b16 %v117
    %v226 = vunpack.c.l.b16 %v118
    %v227 = vunpack.c.h.b16 %v118
    %v228 = vunpack.c.l.b16 %v119
    %v229 = vunpack.c.h.b16 %v119
    %v230 = vunpack.c.l.b16 %v120
    %v231 = vunpack.c.h.b16 %v120
    %v232 = vunpack.c.l.b16 %v121
    %v233 = vunpack.c.h.b16 %v121
    %v234 = vunpack.c.l.b16 %v122
    %v235 = vunpack.c.h.b16 %v122
    %v236 = vunpack.c.l.b16 %v123
    %v237 = vunpack.c.h.b16 %v123
    %v238 = vunpack.c.l.b16 %v124
    %v239 = vunpack.c.h.b16 %v124
    %v240 = vunpack.c.l.b16 %v125
    %v241 = vunpack.c.h.b16 %v125
    %v242 = vunpack.c.l.b16 %v126
    %v243 = vunpack.c.h.b16 %v126
    %v244 = vunpack.c.l.b16 %v127
    %v245 = vunpack.c.h.b16 %v127
    %v246 = vunpack.c.l.b16 %v128
    %v247 = vunpack.c.h.b16 %v128
    %v248 = vunpack.c.l.b16 %v129
    %v249 = vunpack.c.h.b16 %v129
    %v250 = vunpack.c.l.b16 %v130
    %v251 = vunpack.c.h.b16 %v130
    %v252 = vunpack.c.l.b16 %v131
    %v253 = vunpack.c.h.b16 %v131
    %v254 = vunpack.c.l.b16 %v132
    %v255 = vunpack.c.h.b16 %v132
    %v256 = vunpack.c.l.b16 %v133
    %v257 = vunpack.c.h.b16 %v133
    %v258 = vunpack.c.l.b16 %v134
    %v259 = vunpack.c.h.b16 %v134
    %v260 = vunpack.c.l.b16 %v135
    %v261 = vunpack.c.h.b16 %v135
    %v262 = vunpack.c.l.b16 %v136
    %v263 = vunpack.c.h.b16 %v136
    %v264 = vunpack.c.l.b16 %v137
    %v265 = vunpack.c.h.b16 %v137
    %v266 = vunpack.c.l.b16 %v138
    %v267 = vunpack.c.h.b16 %v138
    %v268 = vunpack.c.l.b16 %v139
    %v269 = vunpack.c.h.b16 %v139
    %v270 = vunpack.c.l.b16 %v140
    %v271 = vunpack.c.h.b16 %v140
    %v272 = vunpack.c.l.b16 %v141
    %v273 = vunpack.c.h.b16 %v141
    %v274 = vpack.c.b16 %v212, %v210
    %v275 = vpack.c.b16 %v213, %v211
    %v276 = vpack.c.b16 %v216, %v214
    %v277 = vpack.c.b16 %v217, %v215
    %v278 = vpack.c.b16 %v220, %v218
    %v279 = vpack.c.b16 %v221, %v219
    %v280 = vpack.c.b16 %v224, %v222
    %v281 = vpack.c.b16 %v225, %v223
    %v282 = vpack.c.b16 %v228, %v226
    %v283 = vpack.c.b16 %v229, %v227
    %v284 = vpack.c.b16 %v232, %v230
    %v285 = vpack.c.b16 %v233, %v231
    %v286 = vpack.c.b16 %v236, %v234
    %v287 = vpack.c.b16 %v237, %v235
    %v288 = vpack.c.b16 %v240, %v238
    %v289 = vpack.c.b16 %v241, %v239
    %v290 = vpack.c.b16 %v244, %v242
    %v291 = vpack.c.b16 %v245, %v243
    %v292 = vpack.c.b16 %v248, %v246
    %v293 = vpack.c.b16 %v249, %v247
    %v294 = vpack.c.b16 %v252, %v250
    %v295 = vpack.c.b16 %v253, %v251
    %v296 = vpack.c.b16 %v256, %v254
    %v297 = vpack.c.b16 %v257, %v255
    %v298 = vpack.c.b16 %v260, %v258
    %v299 = vpack.c.b16 %v261, %v259
    %v300 = vpack.c.b16 %v264, %v262
    %v301 = vpack.c.b16 %v265, %v263
    %v302 = vpack.c.b16 %v268, %v266
    %v303 = vpack.c.b16 %v269, %v267
    %v304 = vpack.c.b16 %v272, %v270
    %v305 = vpack.c.b16 %v273, %v271
    %v370 = vunpack.c.l.b16 %v146
    %v371 = vunpack.c.l.b16 %v147
    %v372 = vunpack.c.l.b16 %v148
    %v373 = vunpack.c.l.b16 %v149
    %v374 = vunpack.c.l.b16 %v150
    %v375 = vunpack.c.l.b16 %v151
    %v376 = vunpack.c.l.b16 %v152
    %v377 = vunpack.c.l.b16 %v153
    %v378 = vunpack.c.l.b16 %v154
    %v379 = vunpack.c.l.b16 %v155
    %v380 = vunpack.c.l.b16 %v156
    %v381 = vunpack.c.l.b16 %v157
    %v382 = vunpack.c.l.b16 %v158
    %v383 = vunpack.c.l.b16 %v159
    %v384 = vunpack.c.l.b16 %v160
    %v385 = vunpack.c.l.b16 %v161
    %v386 = vunpack.c.l.b16 %v162
    %v387 = vunpack.c.l.b16 %v163
    %v388 = vunpack.c.l.b16 %v164
    %v389 = vunpack.c.l.b16 %v165
    %v390 = vunpack.c.l.b16 %v166
    %v391 = vunpack.c.l.b16 %v167
    %v392 = vunpack.c.l.b16 %v168
    %v393 = vunpack.c.l.b16 %v169
    %v394 = vunpack.c.l.b16 %v170
    %v395 = vunpack.c.l.b16 %v171
    %v396 = vunpack.c.l.b16 %v172
    %v397 = vunpack.c.l.b16 %v173
    %v398 = vunpack.c.l.b16 %v174
    %v399 = vunpack.c.l.b16 %v175
    %v400 = vunpack.c.l.b16 %v176
    %v401 = vunpack.c.l.b16 %v177
    %v402 = vpack.c.b16 %v371, %v370
    %v403 = vpack.c.b16 %v373, %v372
    %v404 = vpack.c.b16 %v375, %v374
    %v405 = vpack.c.b16 %v377, %v376
    %v406 = vpack.c.b16 %v379, %v378
    %v407 = vpack.c.b16 %v381, %v380
    %v408 = vpack.c.b16 %v383, %v382
    %v409 = vpack.c.b16 %v385, %v384
    %v410 = vpack.c.b16 %v387, %v386
    %v411 = vpack.c.b16 %v389, %v388
    %v412 = vpack.c.b16 %v391, %v390
    %v413 = vpack.c.b16 %v393, %v392
    %v414 = vpack.c.b16 %v395, %v394
    %v415 = vpack.c.b16 %v397, %v396
    %v416 = vpack.c.b16 %v399, %v398
    %v417 = vpack.c.b16 %v401, %v400
    %434 = vmatprep.subr.bf16.mxu0 0
    %435 = vmatpush1.bf16.msra.mxu0 %v402
    %436 = vmatprep.subr.bf16.mxu0 0
    %437 = vmatpush1.bf16.msra.mxu0 %v403
    %438 = vmatprep.subr.bf16.mxu0 0
    %439 = vmatpush1.bf16.msra.mxu0 %v404
    %440 = vmatprep.subr.bf16.mxu0 0
    %441 = vmatpush1.bf16.msra.mxu0 %v405
    %442 = vmatprep.subr.bf16.mxu0 0
    %443 = vmatpush1.bf16.msra.mxu0 %v406
    %444 = vmatprep.subr.bf16.mxu0 0
    %445 = vmatpush1.bf16.msra.mxu0 %v407
    %446 = vmatprep.subr.bf16.mxu0 0
    %447 = vmatpush1.bf16.msra.mxu0 %v408
    %448 = vmatprep.subr.bf16.mxu0 0
    %449 = vmatpush1.bf16.msra.mxu0 %v409
    %450 = vmatprep.subr.bf16.mxu0 0
    %451 = vmatpush1.bf16.msra.mxu0 %v410
    %452 = vmatprep.subr.bf16.mxu0 0
    %453 = vmatpush1.bf16.msra.mxu0 %v411
    %454 = vmatprep.subr.bf16.mxu0 0
    %455 = vmatpush1.bf16.msra.mxu0 %v412
    %456 = vmatprep.subr.bf16.mxu0 0
    %457 = vmatpush1.bf16.msra.mxu0 %v413
    %458 = vmatprep.subr.bf16.mxu0 0
    %459 = vmatpush1.bf16.msra.mxu0 %v414
    %460 = vmatprep.subr.bf16.mxu0 0
    %461 = vmatpush1.bf16.msra.mxu0 %v415
    %462 = vmatprep.subr.bf16.mxu0 0
    %463 = vmatpush1.bf16.msra.mxu0 %v416
    %464 = vmatprep.subr.bf16.mxu0 0
    %465 = vmatpush1.bf16.msra.mxu0 %v417
    %466 = vmatprep.mubr.bf16.mxu0 %v275
    %467 = vmatmul.mubr.bf16.gmra.mrb[0].mxu0 %v274
    %v468 = vpop.f32.mrb[0].mxu0
    %v469 = vadd.f32 0.0, %v468
    %v470 = vpop.f32.mrb[0].mxu0
    %v471 = vpop.f32.mrb[0].mxu0
    %v472 = vadd.f32 0.0, %v471
    %v473 = vpop.f32.mrb[0].mxu0
    %474 = vmatprep.mubr.bf16.mxu0 %v277
    %475 = vmatmul.mubr.bf16.gmra.mrb[0].mxu0 %v276
    %v476 = vpop.f32.mrb[0].mxu0
    %v477 = vadd.f32 0.0, %v476
    %v478 = vpop.f32.mrb[0].mxu0
    %v479 = vpop.f32.mrb[0].mxu0
    %v480 = vadd.f32 0.0, %v479
    %v481 = vpop.f32.mrb[0].mxu0
    %482 = vmatprep.mubr.bf16.mxu0 %v279
    %483 = vmatmul.mubr.bf16.gmra.mrb[0].mxu0 %v278
    %v484 = vpop.f32.mrb[0].mxu0
    %v485 = vadd.f32 0.0, %v484
    %v486 = vpop.f32.mrb[0].mxu0
    %v487 = vpop.f32.mrb[0].mxu0
    %v488 = vadd.f32 0.0, %v487
    %v489 = vpop.f32.mrb[0].mxu0
    %490 = vmatprep.mubr.bf16.mxu0 %v281
    %491 = vmatmul.mubr.bf16.gmra.mrb[0].mxu0 %v280
    %v492 = vpop.f32.mrb[0].mxu0
    %v493 = vadd.f32 0.0, %v492
    %v494 = vpop.f32.mrb[0].mxu0
    %v495 = vpop.f32.mrb[0].mxu0
    %v496 = vadd.f32 0.0, %v495
    %v497 = vpop.f32.mrb[0].mxu0
    %498 = vmatprep.mubr.bf16.mxu0 %v283
    %499 = vmatmul.mubr.bf16.gmra.mrb[0].mxu0 %v282
    %v500 = vpop.f32.mrb[0].mxu0
    %v501 = vadd.f32 0.0, %v500
    %v502 = vpop.f32.mrb[0].mxu0
    %v503 = vpop.f32.mrb[0].mxu0
    %v504 = vadd.f32 0.0, %v503
    %v505 = vpop.f32.mrb[0].mxu0
    %506 = vmatprep.mubr.bf16.mxu0 %v285
    %507 = vmatmul.mubr.bf16.gmra.mrb[0].mxu0 %v284
    %v508 = vpop.f32.mrb[0].mxu0
    %v509 = vadd.f32 0.0, %v508
    %v510 = vpop.f32.mrb[0].mxu0
    %v511 = vpop.f32.mrb[0].mxu0
    %v512 = vadd.f32 0.0, %v511
    %v513 = vpop.f32.mrb[0].mxu0
    %514 = vmatprep.mubr.bf16.mxu0 %v287
    %515 = vmatmul.mubr.bf16.gmra.mrb[0].mxu0 %v286
    %v516 = vpop.f32.mrb[0].mxu0
    %v517 = vadd.f32 0.0, %v516
    %v518 = vpop.f32.mrb[0].mxu0
    %v519 = vpop.f32.mrb[0].mxu0
    %v520 = vadd.f32 0.0, %v519
    %v521 = vpop.f32.mrb[0].mxu0
    %522 = vmatprep.mubr.bf16.mxu0 %v289
    %523 = vmatmul.mubr.bf16.gmra.mrb[0].mxu0 %v288
    %v524 = vpop.f32.mrb[0].mxu0
    %v525 = vadd.f32 0.0, %v524
    %v526 = vpop.f32.mrb[0].mxu0
    %v527 = vpop.f32.mrb[0].mxu0
    %v528 = vadd.f32 0.0, %v527
    %v529 = vpop.f32.mrb[0].mxu0
    %530 = vmatprep.mubr.bf16.mxu0 %v291
    %531 = vmatmul.mubr.bf16.gmra.mrb[0].mxu0 %v290
    %v532 = vpop.f32.mrb[0].mxu0
    %v533 = vadd.f32 0.0, %v532
    %v534 = vpop.f32.mrb[0].mxu0
    %v535 = vpop.f32.mrb[0].mxu0
    %v536 = vadd.f32 0.0, %v535
    %v537 = vpop.f32.mrb[0].mxu0
    %538 = vmatprep.mubr.bf16.mxu0 %v293
    %539 = vmatmul.mubr.bf16.gmra.mrb[0].mxu0 %v292
    %v540 = vpop.f32.mrb[0].mxu0
    %v541 = vadd.f32 0.0, %v540
    %v542 = vpop.f32.mrb[0].mxu0
    %v543 = vpop.f32.mrb[0].mxu0
    %v544 = vadd.f32 0.0, %v543
    %v545 = vpop.f32.mrb[0].mxu0
    %546 = vmatprep.mubr.bf16.mxu0 %v295
    %547 = vmatmul.mubr.bf16.gmra.mrb[0].mxu0 %v294
    %v548 = vpop.f32.mrb[0].mxu0
    %v549 = vadd.f32 0.0, %v548
    %v550 = vpop.f32.mrb[0].mxu0
    %v551 = vpop.f32.mrb[0].mxu0
    %v552 = vadd.f32 0.0, %v551
    %v553 = vpop.f32.mrb[0].mxu0
    %554 = vmatprep.mubr.bf16.mxu0 %v297
    %555 = vmatmul.mubr.bf16.gmra.mrb[0].mxu0 %v296
    %v556 = vpop.f32.mrb[0].mxu0
    %v557 = vadd.f32 0.0, %v556
    %v558 = vpop.f32.mrb[0].mxu0
    %v559 = vpop.f32.mrb[0].mxu0
    %v560 = vadd.f32 0.0, %v559
    %v561 = vpop.f32.mrb[0].mxu0
    %562 = vmatprep.mubr.bf16.mxu0 %v299
    %563 = vmatmul.mubr.bf16.gmra.mrb[0].mxu0 %v298
    %v564 = vpop.f32.mrb[0].mxu0
    %v565 = vadd.f32 0.0, %v564
    %v566 = vpop.f32.mrb[0].mxu0
    %v567 = vpop.f32.mrb[0].mxu0
    %v568 = vadd.f32 0.0, %v567
    %v569 = vpop.f32.mrb[0].mxu0
    %570 = vmatprep.mubr.bf16.mxu0 %v301
    %571 = vmatmul.mubr.bf16.gmra.mrb[0].mxu0 %v300
    %v572 = vpop.f32.mrb[0].mxu0
    %v573 = vadd.f32 0.0, %v572
    %v574 = vpop.f32.mrb[0].mxu0
    %v575 = vpop.f32.mrb[0].mxu0
    %v576 = vadd.f32 0.0, %v575
    %v577 = vpop.f32.mrb[0].mxu0
    %578 = vmatprep.mubr.bf16.mxu0 %v303
    %579 = vmatmul.mubr.bf16.gmra.mrb[0].mxu0 %v302
    %v580 = vpop.f32.mrb[0].mxu0
    %v581 = vadd.f32 0.0, %v580
    %v582 = vpop.f32.mrb[0].mxu0
    %v583 = vpop.f32.mrb[0].mxu0
    %v584 = vadd.f32 0.0, %v583
    %v585 = vpop.f32.mrb[0].mxu0
    %586 = vmatprep.mubr.bf16.mxu0 %v305
    %587 = vmatmul.mubr.bf16.gmra.mrb[0].mxu0 %v304
    %v588 = vpop.f32.mrb[0].mxu0
    %v589 = vadd.f32 0.0, %v588
    %v590 = vpop.f32.mrb[0].mxu0
    %v591 = vpop.f32.mrb[0].mxu0
    %v592 = vadd.f32 0.0, %v591
    %v593 = vpop.f32.mrb[0].mxu0
    %594 = vdwg.mxu0
    %v595 = vadd.f32 %v78, %v469
    %v596 = vadd.f32 %v79, %v472
    %v597 = vadd.f32 %v80, %v477
    %v598 = vadd.f32 %v81, %v480
    %v599 = vadd.f32 %v82, %v485
    %v600 = vadd.f32 %v83, %v488
    %v601 = vadd.f32 %v84, %v493
    %v602 = vadd.f32 %v85, %v496
    %v603 = vadd.f32 %v86, %v501
    %v604 = vadd.f32 %v87, %v504
    %v605 = vadd.f32 %v88, %v509
    %v606 = vadd.f32 %v89, %v512
    %v607 = vadd.f32 %v90, %v517
    %v608 = vadd.f32 %v91, %v520
    %v609 = vadd.f32 %v92, %v525
    %v610 = vadd.f32 %v93, %v528
    %v611 = vadd.f32 %v94, %v533
    %v612 = vadd.f32 %v95, %v536
    %v613 = vadd.f32 %v96, %v541
    %v614 = vadd.f32 %v97, %v544
    %v615 = vadd.f32 %v98, %v549
    %v616 = vadd.f32 %v99, %v552
    %v617 = vadd.f32 %v100, %v557
    %v618 = vadd.f32 %v101, %v560
    %v619 = vadd.f32 %v102, %v565
    %v620 = vadd.f32 %v103, %v568
    %v621 = vadd.f32 %v104, %v573
    %v622 = vadd.f32 %v105, %v576
    %v623 = vadd.f32 %v106, %v581
    %v624 = vadd.f32 %v107, %v584
    %v625 = vadd.f32 %v108, %v589
    %v626 = vadd.f32 %v109, %v592
    %627 = vst [vmem:[#allocation2] sm:$0xff] %v595
    %628 = vst [vmem:[#allocation2 + $0x8] sm:$0xff] %v596
    %629 = vst [vmem:[#allocation2 + $0x10] sm:$0xff] %v597
    %630 = vst [vmem:[#allocation2 + $0x18] sm:$0xff] %v598
    %631 = vst [vmem:[#allocation2 + $0x20] sm:$0xff] %v599
    %632 = vst [vmem:[#allocation2 + $0x28] sm:$0xff] %v600
    %633 = vst [vmem:[#allocation2 + $0x30] sm:$0xff] %v601
    %634 = vst [vmem:[#allocation2 + $0x38] sm:$0xff] %v602
    %635 = vst [vmem:[#allocation2 + $0x40] sm:$0xff] %v603
    %636 = vst [vmem:[#allocation2 + $0x48] sm:$0xff] %v604
    %637 = vst [vmem:[#allocation2 + $0x50] sm:$0xff] %v605
    %638 = vst [vmem:[#allocation2 + $0x58] sm:$0xff] %v606
    %639 = vst [vmem:[#allocation2 + $0x60] sm:$0xff] %v607
    %640 = vst [vmem:[#allocation2 + $0x68] sm:$0xff] %v608
    %641 = vst [vmem:[#allocation2 + $0x70] sm:$0xff] %v609
    %642 = vst [vmem:[#allocation2 + $0x78] sm:$0xff] %v610
    %643 = vst [vmem:[#allocation2 + $0x80] sm:$0xff] %v611
    %644 = vst [vmem:[#allocation2 + $0x88] sm:$0xff] %v612
    %645 = vst [vmem:[#allocation2 + $0x90] sm:$0xff] %v613
    %646 = vst [vmem:[#allocation2 + $0x98] sm:$0xff] %v614
    %647 = vst [vmem:[#allocation2 + $0xa0] sm:$0xff] %v615
    %648 = vst [vmem:[#allocation2 + $0xa8] sm:$0xff] %v616
    %649 = vst [vmem:[#allocation2 + $0xb0] sm:$0xff] %v617
    %650 = vst [vmem:[#allocation2 + $0xb8] sm:$0xff] %v618
    %651 = vst [vmem:[#allocation2 + $0xc0] sm:$0xff] %v619
    %652 = vst [vmem:[#allocation2 + $0xc8] sm:$0xff] %v620
    %653 = vst [vmem:[#allocation2 + $0xd0] sm:$0xff] %v621
    %654 = vst [vmem:[#allocation2 + $0xd8] sm:$0xff] %v622
    %655 = vst [vmem:[#allocation2 + $0xe0] sm:$0xff] %v623
    %656 = vst [vmem:[#allocation2 + $0xe8] sm:$0xff] %v624
    %657 = vst [vmem:[#allocation2 + $0xf0] sm:$0xff] %v625
    %658 = vst [vmem:[#allocation2 + $0xf8] sm:$0xff] %v626
    // Predicated region
    $region22: #{tpu_custom_call.1} parent=1 // pred_check
      %p659 = pneg %p41
    $region23: #{tpu_custom_call.1} parent=1 // pred_check_branch
      %661 = sbr.rel (%p659) target = $region25
    $region24: #{tpu_custom_call.1} parent=1 // pred_region
      %v662 = vld [vmem:[#allocation2] sm:$0xff]
      %v663 = vld [vmem:[#allocation2 + $0x8] sm:$0xff]
      %v664 = vld [vmem:[#allocation2 + $0x10] sm:$0xff]
      %v665 = vld [vmem:[#allocation2 + $0x18] sm:$0xff]
      %v666 = vld [vmem:[#allocation2 + $0x20] sm:$0xff]
      %v667 = vld [vmem:[#allocation2 + $0x28] sm:$0xff]
      %v668 = vld [vmem:[#allocation2 + $0x30] sm:$0xff]
      %v669 = vld [vmem:[#allocation2 + $0x38] sm:$0xff]
      %v670 = vld [vmem:[#allocation2 + $0x40] sm:$0xff]
      %v671 = vld [vmem:[#allocation2 + $0x48] sm:$0xff]
      %v672 = vld [vmem:[#allocation2 + $0x50] sm:$0xff]
      %v673 = vld [vmem:[#allocation2 + $0x58] sm:$0xff]
      %v674 = vld [vmem:[#allocation2 + $0x60] sm:$0xff]
      %v675 = vld [vmem:[#allocation2 + $0x68] sm:$0xff]
      %v676 = vld [vmem:[#allocation2 + $0x70] sm:$0xff]
      %v677 = vld [vmem:[#allocation2 + $0x78] sm:$0xff]
      %v678 = vld [vmem:[#allocation2 + $0x80] sm:$0xff]
      %v679 = vld [vmem:[#allocation2 + $0x88] sm:$0xff]
      %v680 = vld [vmem:[#allocation2 + $0x90] sm:$0xff]
      %v681 = vld [vmem:[#allocation2 + $0x98] sm:$0xff]
      %v682 = vld [vmem:[#allocation2 + $0xa0] sm:$0xff]
      %v683 = vld [vmem:[#allocation2 + $0xa8] sm:$0xff]
      %v684 = vld [vmem:[#allocation2 + $0xb0] sm:$0xff]
      %v685 = vld [vmem:[#allocation2 + $0xb8] sm:$0xff]
      %v686 = vld [vmem:[#allocation2 + $0xc0] sm:$0xff]
      %v687 = vld [vmem:[#allocation2 + $0xc8] sm:$0xff]
      %v688 = vld [vmem:[#allocation2 + $0xd0] sm:$0xff]
      %v689 = vld [vmem:[#allocation2 + $0xd8] sm:$0xff]
      %v690 = vld [vmem:[#allocation2 + $0xe0] sm:$0xff]
      %v691 = vld [vmem:[#allocation2 + $0xe8] sm:$0xff]
      %v692 = vld [vmem:[#allocation2 + $0xf0] sm:$0xff]
      %v693 = vld [vmem:[#allocation2 + $0xf8] sm:$0xff]
      %v694 = vpack.c.bf16 %v663, %v662
      %v695 = vpack.c.bf16 %v665, %v664
      %v696 = vpack.c.bf16 %v667, %v666
      %v697 = vpack.c.bf16 %v669, %v668
      %v698 = vpack.c.bf16 %v671, %v670
      %v699 = vpack.c.bf16 %v673, %v672
      %v700 = vpack.c.bf16 %v675, %v674
      %v701 = vpack.c.bf16 %v677, %v676
      %v702 = vpack.c.bf16 %v679, %v678
      %v703 = vpack.c.bf16 %v681, %v680
      %v704 = vpack.c.bf16 %v683, %v682
      %v705 = vpack.c.bf16 %v685, %v684
      %v706 = vpack.c.bf16 %v687, %v686
      %v707 = vpack.c.bf16 %v689, %v688
      %v708 = vpack.c.bf16 %v691, %v690
      %v709 = vpack.c.bf16 %v693, %v692
      %v726 = vunpack.c.l.b16 %v694
      %v727 = vunpack.c.h.b16 %v694
      %v728 = vunpack.c.l.b16 %v695
      %v729 = vunpack.c.h.b16 %v695
      %v730 = vunpack.c.l.b16 %v696
      %v731 = vunpack.c.h.b16 %v696
      %v732 = vunpack.c.l.b16 %v697
      %v733 = vunpack.c.h.b16 %v697
      %v734 = vunpack.c.l.b16 %v698
      %v735 = vunpack.c.h.b16 %v698
      %v736 = vunpack.c.l.b16 %v699
      %v737 = vunpack.c.h.b16 %v699
      %v738 = vunpack.c.l.b16 %v700
      %v739 = vunpack.c.h.b16 %v700
      %v740 = vunpack.c.l.b16 %v701
      %v741 = vunpack.c.h.b16 %v701
      %v742 = vunpack.c.l.b16 %v702
      %v743 = vunpack.c.h.b16 %v702
      %v744 = vunpack.c.l.b16 %v703
      %v745 = vunpack.c.h.b16 %v703
      %v746 = vunpack.c.l.b16 %v704
      %v747 = vunpack.c.h.b16 %v704
      %v748 = vunpack.c.l.b16 %v705
      %v749 = vunpack.c.h.b16 %v705
      %v750 = vunpack.c.l.b16 %v706
      %v751 = vunpack.c.h.b16 %v706
      %v752 = vunpack.c.l.b16 %v707
      %v753 = vunpack.c.h.b16 %v707
      %v754 = vunpack.c.l.b16 %v708
      %v755 = vunpack.c.h.b16 %v708
      %v756 = vunpack.c.l.b16 %v709
      %v757 = vunpack.c.h.b16 %v709
      %v758 = vpack.c.b16 %v726, %v726
      %v759 = vpack.c.b16 %v727, %v727
      %v760 = vpack.c.b16 %v728, %v728
      %v761 = vpack.c.b16 %v729, %v729
      %v762 = vpack.c.b16 %v730, %v730
      %v763 = vpack.c.b16 %v731, %v731
      %v764 = vpack.c.b16 %v732, %v732
      %v765 = vpack.c.b16 %v733, %v733
      %v766 = vpack.c.b16 %v734, %v734
      %v767 = vpack.c.b16 %v735, %v735
      %v768 = vpack.c.b16 %v736, %v736
      %v769 = vpack.c.b16 %v737, %v737
      %v770 = vpack.c.b16 %v738, %v738
      %v771 = vpack.c.b16 %v739, %v739
      %v772 = vpack.c.b16 %v740, %v740
      %v773 = vpack.c.b16 %v741, %v741
      %v774 = vpack.c.b16 %v742, %v742
      %v775 = vpack.c.b16 %v743, %v743
      %v776 = vpack.c.b16 %v744, %v744
      %v777 = vpack.c.b16 %v745, %v745
      %v778 = vpack.c.b16 %v746, %v746
      %v779 = vpack.c.b16 %v747, %v747
      %v780 = vpack.c.b16 %v748, %v748
      %v781 = vpack.c.b16 %v749, %v749
      %v782 = vpack.c.b16 %v750, %v750
      %v783 = vpack.c.b16 %v751, %v751
      %v784 = vpack.c.b16 %v752, %v752
      %v785 = vpack.c.b16 %v753, %v753
      %v786 = vpack.c.b16 %v754, %v754
      %v787 = vpack.c.b16 %v755, %v755
      %v788 = vpack.c.b16 %v756, %v756
      %v789 = vpack.c.b16 %v757, %v757
      %822 = vst [vmem:[#allocation8] sm:$0xf] %v758
      %823 = vst [vmem:[#allocation8 + $0x4] sm:$0xf] %v759
      %824 = vst [vmem:[#allocation8 + $0x8] sm:$0xf] %v760
      %825 = vst [vmem:[#allocation8 + $0xc] sm:$0xf] %v761
      %826 = vst [vmem:[#allocation8 + $0x10] sm:$0xf] %v762
      %827 = vst [vmem:[#allocation8 + $0x14] sm:$0xf] %v763
      %828 = vst [vmem:[#allocation8 + $0x18] sm:$0xf] %v764
      %829 = vst [vmem:[#allocation8 + $0x1c] sm:$0xf] %v765
      %830 = vst [vmem:[#allocation8 + $0x20] sm:$0xf] %v766
      %831 = vst [vmem:[#allocation8 + $0x24] sm:$0xf] %v767
      %832 = vst [vmem:[#allocation8 + $0x28] sm:$0xf] %v768
      %833 = vst [vmem:[#allocation8 + $0x2c] sm:$0xf] %v769
      %834 = vst [vmem:[#allocation8 + $0x30] sm:$0xf] %v770
      %835 = vst [vmem:[#allocation8 + $0x34] sm:$0xf] %v771
      %836 = vst [vmem:[#allocation8 + $0x38] sm:$0xf] %v772
      %837 = vst [vmem:[#allocation8 + $0x3c] sm:$0xf] %v773
      %838 = vst [vmem:[#allocation8 + $0x40] sm:$0xf] %v774
      %839 = vst [vmem:[#allocation8 + $0x44] sm:$0xf] %v775
      %840 = vst [vmem:[#allocation8 + $0x48] sm:$0xf] %v776
      %841 = vst [vmem:[#allocation8 + $0x4c] sm:$0xf] %v777
      %842 = vst [vmem:[#allocation8 + $0x50] sm:$0xf] %v778
      %843 = vst [vmem:[#allocation8 + $0x54] sm:$0xf] %v779
      %844 = vst [vmem:[#allocation8 + $0x58] sm:$0xf] %v780
      %845 = vst [vmem:[#allocation8 + $0x5c] sm:$0xf] %v781
      %846 = vst [vmem:[#allocation8 + $0x60] sm:$0xf] %v782
      %847 = vst [vmem:[#allocation8 + $0x64] sm:$0xf] %v783
      %848 = vst [vmem:[#allocation8 + $0x68] sm:$0xf] %v784
      %849 = vst [vmem:[#allocation8 + $0x6c] sm:$0xf] %v785
      %850 = vst [vmem:[#allocation8 + $0x70] sm:$0xf] %v786
      %851 = vst [vmem:[#allocation8 + $0x74] sm:$0xf] %v787
      %852 = vst [vmem:[#allocation8 + $0x78] sm:$0xf] %v788
      %853 = vst [vmem:[#allocation8 + $0x7c] sm:$0xf] %v789
    $region25: #{tpu_custom_call.1} parent=1 // pred_fallthru
      _
    // Predicated region
    $region26: #{tpu_custom_call.1} parent=1 // pred_check
      _
    $region27: #{tpu_custom_call.1} parent=1 // pred_check_branch
      %855 = sbr.rel (0) target = $region29
    $region28: #{tpu_custom_call.1} parent=1 // pred_region
      %s857 = ssub.s32 2048, 2048
      %858 = vsyncadd [#allocation5], %s857
      %s859 = sshll.u32 [#allocation8], 4
      %s860 = int_to_ptr.vmem [resolvable:$true] %s859
      %865 = dma.vmem_to_hbm [thread:$0]  %s860, 2048, %s2, [#allocation5], 64, 64, 4
    $region29: #{tpu_custom_call.1} parent=1 // pred_fallthru
      _
    // Predicated region
    $region30: #{tpu_custom_call.1} parent=1 // pred_check
      _
    $region31: #{tpu_custom_call.1} parent=1 // pred_check_branch
      %867 = sbr.rel (0) target = $region33
    $region32: #{tpu_custom_call.1} parent=1 // pred_region
      %868 = dma.done [#allocation5], 2048
    $region33: #{tpu_custom_call.1} parent=1 // pred_fallthru
      _
    %869 = vsyncpa [#allocation4], 1
    %870 = vsyncpa [#allocation7], 1
    %871 = vsyncpa [#allocation5], 1

</llo_original>
